<compile_context>
chip_gen: v5e
topology: v5e:2x2
jax: 0.10.0
libtpu: 0.0.40
codegen_flags: <defaults>
</compile_context>

<pallas_src>
import functools

import jax
import jax.numpy as jnp
from jax.experimental import pallas as pl
from jax.experimental.pallas import tpu as pltpu


def _round_up(n, m):
    return ((n + m - 1) // m) * m


def _mlp_softmax_kernel(x_ref, w1_ref, b1_ref, w2_ref, b2_ref, o_ref, *, d_out):
    # --- linear1 + ReLU (MXU matmul, f32 accumulate; elementwise in f32) ---
    h = jnp.dot(x_ref[...], w1_ref[...], preferred_element_type=jnp.float32)
    h = jnp.maximum(h + b1_ref[...], 0.0)          # (tb, Hp) + (1, Hp)

    # TODO(synk): training-mode dropout (inverted-scale Bernoulli mask) is not
    # implemented; eval-mode dropout is the identity, which is what we compute.

    # --- linear2 ---
    logits = jnp.dot(h.astype(w2_ref.dtype), w2_ref[...],
                     preferred_element_type=jnp.float32)
    logits = logits + b2_ref[...]                  # (tb, Dp) + (1, Dp)

    # Padded output columns (index >= d_out) must not corrupt the softmax:
    # mask them to -inf so exp() contributes exactly 0 to the denominator.
    col = jax.lax.broadcasted_iota(jnp.int32, logits.shape, 1)
    logits = jnp.where(col < d_out, logits, -jnp.inf)

    # --- numerically stable softmax over last dim (f32) ---
    m = jnp.max(logits, axis=-1, keepdims=True)
    e = jnp.exp(logits - m)
    denom = jnp.sum(e, axis=-1, keepdims=True)
    o_ref[...] = (e * pl.reciprocal(denom, approx=True)).astype(o_ref.dtype)


@functools.partial(jax.jit, static_argnames=("block_b", "use_bf16"))
def mlp_onelayer_forward(x, w1, b1, w2, b2, *, block_b=256, use_bf16=True):
    """Fused MLP forward. x: (B, D_in); w1: (D_in, H); w2: (H, D_out)."""
    B, D_in = x.shape
    H = w1.shape[1]
    D_out = w2.shape[1]

    # Lane-dense padding of feature dims (zeros are exact no-ops for matmul;
    # padded logit columns are masked inside the kernel).
    D_in_p = _round_up(D_in, 128)
    H_p = _round_up(H, 128)
    D_out_p = _round_up(D_out, 128)

    # Batch tile: big (amortizes ~600-cycle per-step overhead), but collapse
    # for small batches. Multiple of 16 keeps bf16 sublane packing happy.
    blk = min(block_b, _round_up(B, 16))
    blk = _round_up(blk, 16)
    B_p = _round_up(B, blk)             # cdiv-style: no divisibility assert
    grid = (B_p // blk,)

    compute_dtype = jnp.bfloat16 if use_bf16 else x.dtype
    x_c = x.astype(compute_dtype)
    w1_c = w1.astype(compute_dtype)
    w2_c = w2.astype(compute_dtype)
    b1_c = b1.astype(jnp.float32)
    b2_c = b2.astype(jnp.float32)

    x_p = jnp.pad(x_c, ((0, B_p - B), (0, D_in_p - D_in)))
    w1_p = jnp.pad(w1_c, ((0, D_in_p - D_in), (0, H_p - H)))
    b1_p = jnp.pad(b1_c, ((0, 0), (0, H_p - H)))
    w2_p = jnp.pad(w2_c, ((0, H_p - H), (0, D_out_p - D_out)))
    b2_p = jnp.pad(b2_c, ((0, 0), (0, D_out_p - D_out)))

    # Rough VMEM budget (double-buffered I/O tiles + resident weights +
    # in-kernel intermediates). Only raise the scoped limit if we exceed the
    # 32 MiB default; clamp at v7x's 64 MiB physical VMEM.
    itemsize = jnp.dtype(compute_dtype).itemsize
    vmem_bytes = (
        2 * blk * D_in_p * itemsize
        + 2 * blk * D_out_p * 4
        + 2 * (D_in_p * H_p + H_p * D_out_p) * itemsize
        + 2 * (H_p + D_out_p) * 4
        + 3 * blk * H_p * 4
    )
    cp_kwargs = dict(dimension_semantics=("parallel",))
    if vmem_bytes > (32 << 20):
        cp_kwargs["vmem_limit_bytes"] = min(int(vmem_bytes * 2), 64 << 20)

    out = pl.pallas_call(
        functools.partial(_mlp_softmax_kernel, d_out=D_out),
        out_shape=jax.ShapeDtypeStruct((B_p, D_out_p), jnp.float32),
        grid=grid,
        in_specs=[
            # batch tile of the (padded) input
            pl.BlockSpec((blk, D_in_p), lambda i: (i, 0)),
            # full (small) weights / biases, resident for every tile
            pl.BlockSpec((D_in_p, H_p), lambda i: (0, 0)),
            pl.BlockSpec((1, H_p), lambda i: (0, 0)),
            pl.BlockSpec((H_p, D_out_p), lambda i: (0, 0)),
            pl.BlockSpec((1, D_out_p), lambda i: (0, 0)),
        ],
        out_specs=pl.BlockSpec((blk, D_out_p), lambda i: (i, 0)),
        compiler_params=pltpu.CompilerParams(**cp_kwargs),
    )(x_p, w1_p, b1_p, w2_p, b2_p)

    return {"x_final": out[:B, :D_out]}


def init_params(key, D_in, H, D_out, init_std=0.02):
    """Deterministic init mirroring init_weights (normal weights, zero biases).
    Weights returned already transposed for the x @ W layout."""
    k1, k2 = jax.random.split(key)
    # PyTorch linear1.weight has shape (H, D_in); we store its transpose.
    w1 = (init_std * jax.random.normal(k1, (H, D_in), jnp.float32)).T
    b1 = jnp.zeros((1, H), jnp.float32)
    # linear2.weight has shape (D_out, H); store transpose.
    w2 = (init_std * jax.random.normal(k2, (D_out, H), jnp.float32)).T
    b2 = jnp.zeros((1, D_out), jnp.float32)
    return w1, b1, w2, b2


def reference_forward(x, w1, b1, w2, b2, compute_dtype=jnp.bfloat16):
    """Plain-JAX reference using the same MXU-operand dtypes as the kernel."""
    xd = x.astype(compute_dtype)
    w1d = w1.astype(compute_dtype)
    w2d = w2.astype(compute_dtype)
    h = jnp.dot(xd, w1d, preferred_element_type=jnp.float32) + b1
    h = jnp.maximum(h, 0.0)
    logits = jnp.dot(h.astype(compute_dtype), w2d,
                     preferred_element_type=jnp.float32) + b2
    return jax.nn.softmax(logits, axis=-1)


if __name__ == "__main__":
    # Small shapes consistent with the module's forward: (B, D_in) input.
    B, D_in, H, D_out = 16, 16, 32, 8
    key = jax.random.PRNGKey(0)
    kx, kp = jax.random.split(key)

    x = jax.random.normal(kx, (B, D_in), jnp.float32)
    w1, b1, w2, b2 = init_params(kp, D_in, H, D_out, init_std=0.02)

    out = mlp_onelayer_forward(x, w1, b1, w2, b2, block_b=256, use_bf16=True)
    x_final = jax.block_until_ready(out["x_final"])

    # sanity check against plain-JAX reference (same bf16 operands, f32 acc;
    # tolerance covers the approx EUP reciprocal in the softmax normalizer)
    ref = reference_forward(x, w1, b1, w2, b2, compute_dtype=jnp.bfloat16)
    assert x_final.shape == (B, D_out)
    assert jnp.allclose(x_final, ref, atol=2e-3, rtol=2e-3)
    # softmax rows sum to ~1
    assert jnp.allclose(jnp.sum(x_final, axis=-1), 1.0, atol=2e-3)

    print("KERNEL_OK")
</pallas_src>

<mosaic_0001>
module attributes {stable_mosaic.version = 11 : i64} {
  func.func @_mlp_softmax_kernel(%arg0: i32, %arg1: memref<16x128xbf16, #tpu.memory_space<vmem>>, %arg2: memref<128x128xbf16, #tpu.memory_space<vmem>>, %arg3: memref<1x128xf32, #tpu.memory_space<vmem>>, %arg4: memref<128x128xbf16, #tpu.memory_space<vmem>>, %arg5: memref<1x128xf32, #tpu.memory_space<vmem>>, %arg6: memref<16x128xf32, #tpu.memory_space<vmem>>) attributes {dimension_semantics = [#tpu.dimension_semantics<parallel>], iteration_bounds = array<i64: 1>, scalar_prefetch = 0 : i64, scratch_operands = 0 : i64, tpu.core_type = #tpu.core_type<tc>, window_params = [{transform_indices = @transform_0, window_bounds = array<i64: 16, 128>}, {pipeline_mode = #tpu.pipeline_mode<synchronous>, transform_indices = @transform_1, window_bounds = array<i64: 128, 128>}, {pipeline_mode = #tpu.pipeline_mode<synchronous>, transform_indices = @transform_2, window_bounds = array<i64: 1, 128>}, {pipeline_mode = #tpu.pipeline_mode<synchronous>, transform_indices = @transform_3, window_bounds = array<i64: 128, 128>}, {pipeline_mode = #tpu.pipeline_mode<synchronous>, transform_indices = @transform_4, window_bounds = array<i64: 1, 128>}, {transform_indices = @transform_5, window_bounds = array<i64: 16, 128>}]} {
    %c0 = arith.constant 0 : index
    %c0_0 = arith.constant 0 : index
    %0 = vector.load %arg1[%c0, %c0_0] : memref<16x128xbf16, #tpu.memory_space<vmem>>, vector<16x128xbf16>
    %c0_1 = arith.constant 0 : index
    %c0_2 = arith.constant 0 : index
    %1 = vector.load %arg2[%c0_1, %c0_2] : memref<128x128xbf16, #tpu.memory_space<vmem>>, vector<128x128xbf16>
    %cst = arith.constant dense<0.000000e+00> : vector<16x128xf32>
    %2 = tpu.matmul %0, %1, %cst {dimension_numbers = #tpu.dot_dimension_numbers<[1], [0], [0], [1], [0, 0, 1, 1], [], []>} : vector<16x128xbf16>, vector<128x128xbf16>, vector<16x128xf32> -> vector<16x128xf32>
    %c0_3 = arith.constant 0 : index
    %c0_4 = arith.constant 0 : index
    %3 = vector.load %arg3[%c0_3, %c0_4] : memref<1x128xf32, #tpu.memory_space<vmem>>, vector<1x128xf32>
    %4 = vector.broadcast %3 : vector<1x128xf32> to vector<16x128xf32>
    %5 = arith.addf %2, %4 : vector<16x128xf32>
    %cst_5 = arith.constant 0.000000e+00 : f32
    %6 = vector.broadcast %cst_5 : f32 to vector<16x128xf32>
    %7 = arith.maximumf %5, %6 : vector<16x128xf32>
    %8 = arith.truncf %7 : vector<16x128xf32> to vector<16x128xbf16>
    %c0_6 = arith.constant 0 : index
    %c0_7 = arith.constant 0 : index
    %9 = vector.load %arg4[%c0_6, %c0_7] : memref<128x128xbf16, #tpu.memory_space<vmem>>, vector<128x128xbf16>
    %cst_8 = arith.constant dense<0.000000e+00> : vector<16x128xf32>
    %10 = tpu.matmul %8, %9, %cst_8 {dimension_numbers = #tpu.dot_dimension_numbers<[1], [0], [0], [1], [0, 0, 1, 1], [], []>} : vector<16x128xbf16>, vector<128x128xbf16>, vector<16x128xf32> -> vector<16x128xf32>
    %c0_9 = arith.constant 0 : index
    %c0_10 = arith.constant 0 : index
    %11 = vector.load %arg5[%c0_9, %c0_10] : memref<1x128xf32, #tpu.memory_space<vmem>>, vector<1x128xf32>
    %12 = vector.broadcast %11 : vector<1x128xf32> to vector<16x128xf32>
    %13 = arith.addf %10, %12 : vector<16x128xf32>
    %14 = tpu.iota {dimensions = array<i32: 1>} : vector<16x128xi32>
    %c8_i32 = arith.constant 8 : i32
    %15 = vector.broadcast %c8_i32 : i32 to vector<16x128xi32>
    %16 = arith.cmpi slt, %14, %15 : vector<16x128xi32>
    %cst_11 = arith.constant 0xFF800000 : f32
    %17 = vector.broadcast %cst_11 : f32 to vector<16x128xf32>
    %18 = arith.select %16, %13, %17 : vector<16x128xi1>, vector<16x128xf32>
    %cst_12 = arith.constant dense<0xFF800000> : vector<16xf32>
    %19 = vector.multi_reduction <maximumf>, %18, %cst_12 [1] : vector<16x128xf32> to vector<16xf32>
    %20 = vector.shape_cast %19 : vector<16xf32> to vector<16x1xf32>
    %21 = vector.broadcast %20 : vector<16x1xf32> to vector<16x128xf32>
    %22 = arith.subf %18, %21 : vector<16x128xf32>
    %23 = math.exp %22 : vector<16x128xf32>
    %cst_13 = arith.constant dense<0.000000e+00> : vector<16xf32>
    %24 = vector.multi_reduction <add>, %23, %cst_13 [1] : vector<16x128xf32> to vector<16xf32>
    %25 = vector.shape_cast %24 : vector<16xf32> to vector<16x1xf32>
    %26 = tpu.reciprocal %25 {approx = true} : vector<16x1xf32> -> vector<16x1xf32>
    %27 = vector.broadcast %26 : vector<16x1xf32> to vector<16x128xf32>
    %28 = arith.mulf %23, %27 : vector<16x128xf32>
    %c0_14 = arith.constant 0 : index
    %c0_15 = arith.constant 0 : index
    %29 = vector.load %arg6[%c0_14, %c0_15] : memref<16x128xf32, #tpu.memory_space<vmem>>, vector<16x128xf32>
    tpu.vector_store %arg6[%c0_14, %c0_15], %28 {strides = array<i32>} : memref<16x128xf32, #tpu.memory_space<vmem>>, vector<16x128xf32>,
    return
  }
  func.func @transform_0(%arg0: i32) -> (i32, i32) {
    %c0_i32 = arith.constant 0 : i32
    %c0_i32_0 = arith.constant 0 : i32
    return %arg0, %c0_i32 : i32, i32
  }
  func.func @transform_1(%arg0: i32) -> (i32, i32) {
    %c0_i32 = arith.constant 0 : i32
    %c0_i32_0 = arith.constant 0 : i32
    %c0_i32_1 = arith.constant 0 : i32
    return %c0_i32, %c0_i32_0 : i32, i32
  }
  func.func @transform_2(%arg0: i32) -> (i32, i32) {
    %c0_i32 = arith.constant 0 : i32
    %c0_i32_0 = arith.constant 0 : i32
    %c0_i32_1 = arith.constant 0 : i32
    return %c0_i32, %c0_i32_0 : i32, i32
  }
  func.func @transform_3(%arg0: i32) -> (i32, i32) {
    %c0_i32 = arith.constant 0 : i32
    %c0_i32_0 = arith.constant 0 : i32
    %c0_i32_1 = arith.constant 0 : i32
    return %c0_i32, %c0_i32_0 : i32, i32
  }
  func.func @transform_4(%arg0: i32) -> (i32, i32) {
    %c0_i32 = arith.constant 0 : i32
    %c0_i32_0 = arith.constant 0 : i32
    %c0_i32_1 = arith.constant 0 : i32
    return %c0_i32, %c0_i32_0 : i32, i32
  }
  func.func @transform_5(%arg0: i32) -> (i32, i32) {
    %c0_i32 = arith.constant 0 : i32
    %c0_i32_0 = arith.constant 0 : i32
    return %arg0, %c0_i32 : i32, i32
  }
}

</mosaic_0001>

<llo_original>
// kernel: mlp_onelayer_forward.1
$region0: #{mlp_onelayer_forward.1}
  #allocation0 [shape = 'u32[]', space=smem, size = 0x4, offset = 0x4, fixed_abs, tag = 'smem constant byte address 0x4 - core index']
  #allocation1 [shape = 'u32[72,128]{1,0:T(1,128)}', space=vmem, size = 0x9000, scoped, tag = 'internal scratch']
  %s0 = inlined_call_operand.vmem [shape: bf16[16,128], index: 0, kind: input, shape index: {}]
  %s1 = inlined_call_operand.vmem [shape: bf16[128,128], index: 1, kind: input, shape index: {}]
  %s2 = inlined_call_operand.vmem [shape: f32[1,128], index: 2, kind: input, shape index: {}]
  %s3 = inlined_call_operand.vmem [shape: bf16[128,128], index: 3, kind: input, shape index: {}]
  %s4 = inlined_call_operand.vmem [shape: f32[1,128], index: 4, kind: input, shape index: {}]
  %s5 = inlined_call_operand.vmem [shape: f32[16,128], index: 5, kind: output, shape index: {}]
  %s6 = sld [smem:[#allocation0]]
  $region30: #{mlp_onelayer_forward.1} parent=0
    _
  %s8 = ssub.s32 1, %s6
  %s9 = scalar_select 0, %s8, %s6
  // Predicated region
  $region2: #{mlp_onelayer_forward.1} parent=0 // pred_check
    _
  $region3: #{mlp_onelayer_forward.1} parent=0 // pred_check_branch
    %11 = sbr.rel (0) target = $region5
  $region4: #{mlp_onelayer_forward.1} parent=0 // pred_region
    _
  $region5: #{mlp_onelayer_forward.1} parent=0 // pred_fallthru
    _
  // Predicated region
  $region6: #{mlp_onelayer_forward.1} parent=0 // pred_check
    _
  $region7: #{mlp_onelayer_forward.1} parent=0 // pred_check_branch
    %13 = sbr.rel (0) target = $region9
  $region8: #{mlp_onelayer_forward.1} parent=0 // pred_region
    _
  $region9: #{mlp_onelayer_forward.1} parent=0 // pred_fallthru
    _
  // Predicated region
  $region10: #{mlp_onelayer_forward.1} parent=0 // pred_check
    _
  $region11: #{mlp_onelayer_forward.1} parent=0 // pred_check_branch
    %15 = sbr.rel (0) target = $region13
  $region12: #{mlp_onelayer_forward.1} parent=0 // pred_region
    _
  $region13: #{mlp_onelayer_forward.1} parent=0 // pred_fallthru
    _
  // Predicated region
  $region14: #{mlp_onelayer_forward.1} parent=0 // pred_check
    _
  $region15: #{mlp_onelayer_forward.1} parent=0 // pred_check_branch
    %17 = sbr.rel (0) target = $region17
  $region16: #{mlp_onelayer_forward.1} parent=0 // pred_region
    _
  $region17: #{mlp_onelayer_forward.1} parent=0 // pred_fallthru
    _
  // Predicated region
  $region18: #{mlp_onelayer_forward.1} parent=0 // pred_check
    _
  $region19: #{mlp_onelayer_forward.1} parent=0 // pred_check_branch
    %19 = sbr.rel (0) target = $region21
  $region20: #{mlp_onelayer_forward.1} parent=0 // pred_region
    _
  $region21: #{mlp_onelayer_forward.1} parent=0 // pred_fallthru
    _
  %v20 = vld [vmem:[%s0] sm:$0xf]
  %v21 = vld [vmem:[%s0 + $0x4] sm:$0xf]
  %v22 = vld [vmem:[%s1] sm:$0xf]
  %v23 = vld [vmem:[%s1 + $0x4] sm:$0xf]
  %v24 = vld [vmem:[%s1 + $0x8] sm:$0xf]
  %v25 = vld [vmem:[%s1 + $0xc] sm:$0xf]
  %v26 = vld [vmem:[%s1 + $0x10] sm:$0xf]
  %v27 = vld [vmem:[%s1 + $0x14] sm:$0xf]
  %v28 = vld [vmem:[%s1 + $0x18] sm:$0xf]
  %v29 = vld [vmem:[%s1 + $0x1c] sm:$0xf]
  %v30 = vld [vmem:[%s1 + $0x20] sm:$0xf]
  %v31 = vld [vmem:[%s1 + $0x24] sm:$0xf]
  %v32 = vld [vmem:[%s1 + $0x28] sm:$0xf]
  %v33 = vld [vmem:[%s1 + $0x2c] sm:$0xf]
  %v34 = vld [vmem:[%s1 + $0x30] sm:$0xf]
  %v35 = vld [vmem:[%s1 + $0x34] sm:$0xf]
  %v36 = vld [vmem:[%s1 + $0x38] sm:$0xf]
  %v37 = vld [vmem:[%s1 + $0x3c] sm:$0xf]
  %v38 = vld [vmem:[%s2] sm:$0x1]
  %v40 = vperm.slane %v38, 0
  %v44 = vunpack.c.l.b16 %v20
  %v45 = vunpack.c.l.b16 %v21
  %v46 = vpack.c.b16 %v45, %v44
  %v64 = vunpack.c.l.b16 %v22
  %v65 = vunpack.c.l.b16 %v23
  %v66 = vunpack.c.l.b16 %v24
  %v67 = vunpack.c.l.b16 %v25
  %v68 = vunpack.c.l.b16 %v26
  %v69 = vunpack.c.l.b16 %v27
  %v70 = vunpack.c.l.b16 %v28
  %v71 = vunpack.c.l.b16 %v29
  %v72 = vunpack.c.l.b16 %v30
  %v73 = vunpack.c.l.b16 %v31
  %v74 = vunpack.c.l.b16 %v32
  %v75 = vunpack.c.l.b16 %v33
  %v76 = vunpack.c.l.b16 %v34
  %v77 = vunpack.c.l.b16 %v35
  %v78 = vunpack.c.l.b16 %v36
  %v79 = vunpack.c.l.b16 %v37
  %v80 = vpack.c.b16 %v65, %v64
  %v81 = vpack.c.b16 %v67, %v66
  %v82 = vpack.c.b16 %v69, %v68
  %v83 = vpack.c.b16 %v71, %v70
  %v84 = vpack.c.b16 %v73, %v72
  %v85 = vpack.c.b16 %v75, %v74
  %v86 = vpack.c.b16 %v77, %v76
  %v87 = vpack.c.b16 %v79, %v78
  %96 = vmatpush.bf16.msra.mxu0 %v87
  %97 = vmatpush.bf16.msra.mxu0 %v86
  %98 = vmatpush.bf16.msra.mxu0 %v85
  %99 = vmatpush.bf16.msra.mxu0 %v84
  %100 = vmatpush.bf16.msra.mxu0 %v83
  %101 = vmatpush.bf16.msra.mxu0 %v82
  %102 = vmatpush.bf16.msra.mxu0 %v81
  %103 = vmatpush.bf16.msra.mxu0 %v80
  %104 = vmatmul.bf16.gmra.mxu0 %v46
  %v105 = vpop.f32.mrf.mxu0
  %v106 = vadd.f32 %v40, %v105
  %v107 = vpop.f32.mrf.mxu0
  %v108 = vadd.f32 %v40, %v107
  %109 = vdwg.mxu0
  %v110 = vmax.f32 %v106, 0.0
  %v111 = vmax.f32 %v108, 0.0
  %v112 = vpack.c.bf16 %v111, %v110
  %v113 = vld [vmem:[%s3] sm:$0xf]
  %v114 = vld [vmem:[%s3 + $0x4] sm:$0xf]
  %v115 = vld [vmem:[%s3 + $0x8] sm:$0xf]
  %v116 = vld [vmem:[%s3 + $0xc] sm:$0xf]
  %v117 = vld [vmem:[%s3 + $0x10] sm:$0xf]
  %v118 = vld [vmem:[%s3 + $0x14] sm:$0xf]
  %v119 = vld [vmem:[%s3 + $0x18] sm:$0xf]
  %v120 = vld [vmem:[%s3 + $0x1c] sm:$0xf]
  %v121 = vld [vmem:[%s3 + $0x20] sm:$0xf]
  %v122 = vld [vmem:[%s3 + $0x24] sm:$0xf]
  %v123 = vld [vmem:[%s3 + $0x28] sm:$0xf]
  %v124 = vld [vmem:[%s3 + $0x2c] sm:$0xf]
  %v125 = vld [vmem:[%s3 + $0x30] sm:$0xf]
  %v126 = vld [vmem:[%s3 + $0x34] sm:$0xf]
  %v127 = vld [vmem:[%s3 + $0x38] sm:$0xf]
  %v128 = vld [vmem:[%s3 + $0x3c] sm:$0xf]
  %v129 = vld [vmem:[%s4] sm:$0x1]
  %v131 = vperm.slane %v129, 0
  %v149 = vunpack.c.l.b16 %v113
  %v150 = vunpack.c.l.b16 %v114
  %v151 = vunpack.c.l.b16 %v115
  %v152 = vunpack.c.l.b16 %v116
  %v153 = vunpack.c.l.b16 %v117
  %v154 = vunpack.c.l.b16 %v118
  %v155 = vunpack.c.l.b16 %v119
  %v156 = vunpack.c.l.b16 %v120
  %v157 = vunpack.c.l.b16 %v121
  %v158 = vunpack.c.l.b16 %v122
  %v159 = vunpack.c.l.b16 %v123
  %v160 = vunpack.c.l.b16 %v124
  %v161 = vunpack.c.l.b16 %v125
  %v162 = vunpack.c.l.b16 %v126
  %v163 = vunpack.c.l.b16 %v127
  %v164 = vunpack.c.l.b16 %v128
  %v165 = vpack.c.b16 %v150, %v149
  %v166 = vpack.c.b16 %v152, %v151
  %v167 = vpack.c.b16 %v154, %v153
  %v168 = vpack.c.b16 %v156, %v155
  %v169 = vpack.c.b16 %v158, %v157
  %v170 = vpack.c.b16 %v160, %v159
  %v171 = vpack.c.b16 %v162, %v161
  %v172 = vpack.c.b16 %v164, %v163
  %181 = vmatpush.bf16.msra.mxu0 %v172
  %182 = vmatpush.bf16.msra.mxu0 %v171
  %183 = vmatpush.bf16.msra.mxu0 %v170
  %184 = vmatpush.bf16.msra.mxu0 %v169
  %185 = vmatpush.bf16.msra.mxu0 %v168
  %186 = vmatpush.bf16.msra.mxu0 %v167
  %187 = vmatpush.bf16.msra.mxu0 %v166
  %188 = vmatpush.bf16.msra.mxu0 %v165
  %189 = vmatmul.bf16.gmra.mxu0 %v112
  %v190 = vpop.f32.mrf.mxu0
  %v191 = vadd.f32 %v131, %v190
  %v192 = vpop.f32.mrf.mxu0
  %v193 = vadd.f32 %v131, %v192
  %194 = vdwg.mxu0
  %v195 = vlaneseq
  %v196 = vand.u32 %v195, 127
  %vm197 = vcmp.lt.s32.totalorder %v196, 8
  %v198 = vsel %vm197, %v191, -inf
  %v199 = vsel %vm197, %v193, -inf
  %200 = vmax.xlane.f32.xlu0 %v198
  %v201 = vpop.xlane.xlu0 %200
  %202 = vmax.xlane.f32.xlu0 %v199
  %v203 = vpop.xlane.xlu0 %202
  %v204 = vsub.f32 %v198, %v201
  %v205 = vsub.f32 %v199, %v203
  %v206 = vmul.f32 %v204, 1.442695
  %v207 = vpow.pop %v206
  %v208 = vmul.f32 %v205, 1.442695
  %v209 = vpow.pop %v208
  %210 = vadd.xlane.f32.xlu0 %v207
  %v211 = vpop.xlane.xlu0 %210
  %212 = vadd.xlane.f32.xlu0 %v209
  %v213 = vpop.xlane.xlu0 %212
  %v214 = vrcp.pop %v211
  %v215 = vrcp.pop %v213
  %v216 = vmul.f32 %v207, %v214
  %v217 = vmul.f32 %v209, %v215
  %218 = vst [vmem:[%s5] sm:$0xff] %v216
  %219 = vst [vmem:[%s5 + $0x8] sm:$0xff] %v217
  // Predicated region
  $region22: #{mlp_onelayer_forward.1} parent=0 // pred_check
    _
  $region23: #{mlp_onelayer_forward.1} parent=0 // pred_check_branch
    %221 = sbr.rel (0) target = $region25
  $region24: #{mlp_onelayer_forward.1} parent=0 // pred_region
    _
  $region25: #{mlp_onelayer_forward.1} parent=0 // pred_fallthru
    _
  // Predicated region
  $region26: #{mlp_onelayer_forward.1} parent=0 // pred_check
    _
  $region27: #{mlp_onelayer_forward.1} parent=0 // pred_check_branch
    %223 = sbr.rel (0) target = $region29
  $region28: #{mlp_onelayer_forward.1} parent=0 // pred_region
    _
  $region29: #{mlp_onelayer_forward.1} parent=0 // pred_fallthru
    _

</llo_original>
